<compile_context>
chip_gen: v5e
topology: v5e:2x2
jax: 0.10.0
libtpu: 0.0.40
codegen_flags: <defaults>
</compile_context>

<pallas_src>
import jax
import jax.numpy as jnp
import numpy as np
from jax.experimental import pallas as pl
from jax.experimental.pallas import tpu as pltpu

_VMEM_LIMIT = 48 * 1024 * 1024    # scoped VMEM: safe on v7x (64 MiB), ample on v5e/v6e
_TILE_BUDGET = 20 * 1024 * 1024   # working-set budget for double-buffered tiles
_BN_EPS = 1e-5                    # PyTorch BatchNorm2d default


# ---------------------------------------------------------------------------
# parameter / layout helpers
# ---------------------------------------------------------------------------

def _fold_bn(w, gamma, beta, mean, var, eps=_BN_EPS):
    """Fold eval-mode BatchNorm into a bias-free 1x1 conv: y = W' x + b'."""
    scale = gamma / jnp.sqrt(var + eps)                 # (Cout,)
    w_f = (w * scale[:, None]).astype(jnp.float32)      # (Cout, Cin)
    b_f = (beta - scale * mean).astype(jnp.float32)     # (Cout,)
    return w_f, b_f.reshape(-1, 1)


def _choose_tile(hw, cin, cout, itemsize):
    """Largest lane tile (multiple of 128) whose double-buffered working set fits."""
    hw128 = ((hw + 127) // 128) * 128
    tile = 128
    for cand in (1024, 512, 256, 128):
        if cand > hw128:
            continue
        # in tile + out tile, double buffered, plus one f32 compute temp
        work = 2 * (cin + cout) * cand * itemsize + (cin + cout) * cand * 4
        if work <= _TILE_BUDGET:
            tile = cand
            break
    hw_padded = ((hw + tile - 1) // tile) * tile
    return hw_padded, tile


# ---------------------------------------------------------------------------
# kernels
# ---------------------------------------------------------------------------

def _split_conv_se_sum_kernel(x_ref, w_ref, b_ref, y_ref, s_ref):
    # x: (Cin, T), w: (Cmid, Cin) f32, b: (Cmid, 1) f32
    # y: (Cmid, T) activation dtype, s: (Cmid, 1) f32 resident spatial-sum acc.
    @pl.when(pl.program_id(1) == 0)
    def _():
        s_ref[...] = jnp.zeros_like(s_ref)

    y = jnp.dot(w_ref[...], x_ref[...], preferred_element_type=jnp.float32)
    y = jnp.maximum(y + b_ref[...], 0.0)
    y_ref[...] = y.astype(y_ref.dtype)
    s_ref[...] += jnp.sum(y, axis=1, keepdims=True)


def _gated_conv_relu_kernel(y_ref, w_ref, b_ref, o_ref):
    # y: (Cmid, T), w: (Cout, Cmid) per-image GATED f32 weights, b: (Cout, 1)
    z = jnp.dot(w_ref[...], y_ref[...], preferred_element_type=jnp.float32)
    o_ref[...] = jnp.maximum(z + b_ref[...], 0.0).astype(o_ref.dtype)


# ---------------------------------------------------------------------------
# stage forward
# ---------------------------------------------------------------------------

def csp_res_stage_forward(x, params):
    """CSPResStage.forward for the stride=1 configuration (conv_down is None)."""
    N, Cin, H, W = x.shape
    HW = H * W

    w1, b1 = _fold_bn(params["conv1_w"], *params["bn1"])
    w2, b2 = _fold_bn(params["conv2_w"], *params["bn2"])
    w3, b3 = _fold_bn(params["conv3_w"], *params["bn3"])

    # Channel concat fused into one weight: y_cat = relu([W1;W2] x + [b1;b2]).
    w_cat = jnp.concatenate([w1, w2], axis=0)            # (Cmid, Cin)
    b_cat = jnp.concatenate([b1, b2], axis=0)            # (Cmid, 1)
    Cmid = w_cat.shape[0]
    Cout = w3.shape[0]

    HWp, T = _choose_tile(HW, Cin, max(Cmid, Cout), jnp.dtype(x.dtype).itemsize)
    n_tiles = HWp // T
    pad = HWp - HW

    x3 = x.reshape(N, Cin, HW)
    if pad:
        x3 = jnp.pad(x3, ((0, 0), (0, 0), (0, pad)))     # padded ONCE at entry

    # ---- Pass A: fused conv1+conv2 (+concat) + ReLU, SE sum accumulated ----
    y_cat, sums = pl.pallas_call(
        _split_conv_se_sum_kernel,
        out_shape=(jax.ShapeDtypeStruct((N, Cmid, HWp), x.dtype),
                   jax.ShapeDtypeStruct((N, Cmid, 1), jnp.float32)),
        grid_spec=pltpu.PrefetchScalarGridSpec(
            num_scalar_prefetch=0,
            grid=(N, n_tiles),
            in_specs=[
                pl.BlockSpec((pl.Squeezed(), Cin, T), lambda n, j: (n, 0, j)),
                pl.BlockSpec((Cmid, Cin), lambda n, j: (0, 0)),
                pl.BlockSpec((Cmid, 1), lambda n, j: (0, 0)),
            ],
            out_specs=[
                pl.BlockSpec((pl.Squeezed(), Cmid, T), lambda n, j: (n, 0, j)),
                pl.BlockSpec((pl.Squeezed(), Cmid, 1), lambda n, j: (n, 0, 0)),
            ],
        ),
        compiler_params=pltpu.CompilerParams(
            dimension_semantics=("parallel", "arbitrary"),
            vmem_limit_bytes=_VMEM_LIMIT),
    )(x3, w_cat, b_cat)

    # ---- Tiny per-image epilogue (plain JAX on (N, C) scalars) ----
    # Padded input lanes are zero -> conv output there is exactly relu(b_cat);
    # subtract that contribution analytically so the spatial mean is exact.
    sums2 = sums[:, :, 0]                                 # (N, Cmid) f32
    if pad:
        sums2 = sums2 - pad * jnp.maximum(b_cat[:, 0], 0.0)[None, :]
    se = sums2 * (1.0 / HW)                               # spatial mean
    se = jnp.einsum("nc,oc->no", se, params["se_w"].astype(jnp.float32),
                    precision=jax.lax.Precision.HIGHEST) \
        + params["se_b"].astype(jnp.float32)[None, :]
    gate = jnp.clip(se * (1.0 / 6.0) + 0.5, 0.0, 1.0)     # PyTorch hardsigmoid
    w3_g = w3[None, :, :] * gate[:, None, :]              # (N, Cout, Cmid) f32

    # ---- Pass B: fused SE-apply + conv3 + BN + ReLU ----
    out3 = pl.pallas_call(
        _gated_conv_relu_kernel,
        out_shape=jax.ShapeDtypeStruct((N, Cout, HWp), x.dtype),
        grid_spec=pltpu.PrefetchScalarGridSpec(
            num_scalar_prefetch=0,
            grid=(N, n_tiles),
            in_specs=[
                pl.BlockSpec((pl.Squeezed(), Cmid, T), lambda n, j: (n, 0, j)),
                pl.BlockSpec((pl.Squeezed(), Cout, Cmid), lambda n, j: (n, 0, 0)),
                pl.BlockSpec((Cout, 1), lambda n, j: (0, 0)),
            ],
            out_specs=pl.BlockSpec((pl.Squeezed(), Cout, T),
                                   lambda n, j: (n, 0, j)),
        ),
        compiler_params=pltpu.CompilerParams(
            dimension_semantics=("parallel", "parallel"),
            vmem_limit_bytes=_VMEM_LIMIT),
    )(y_cat, w3_g, b3)

    if pad:
        out3 = out3[:, :, :HW]                            # single depad at the end
    return out3.reshape(N, Cout, H, W)


# ---------------------------------------------------------------------------
# pure-JAX reference and test
# ---------------------------------------------------------------------------

def _reference(x, params):
    hp = jax.lax.Precision.HIGHEST

    def conv_bn_relu(v, w, bn):
        gamma, beta, mean, var = bn
        y = jnp.einsum("oc,nchw->nohw", w, v, precision=hp)
        scale = gamma / jnp.sqrt(var + _BN_EPS)
        y = (y - mean[None, :, None, None]) * scale[None, :, None, None] \
            + beta[None, :, None, None]
        return jnp.maximum(y, 0.0)

    y1 = conv_bn_relu(x, params["conv1_w"], params["bn1"])
    y2 = conv_bn_relu(x, params["conv2_w"], params["bn2"])
    y = jnp.concatenate([y1, y2], axis=1)
    se = jnp.mean(y, axis=(2, 3))                                     # (N, C)
    se = jnp.einsum("oc,nc->no", params["se_w"], se, precision=hp) \
        + params["se_b"][None, :]
    gate = jnp.clip(se / 6.0 + 0.5, 0.0, 1.0)                         # hardsigmoid
    y = y * gate[:, :, None, None]
    return conv_bn_relu(y, params["conv3_w"], params["bn3"])


if __name__ == "__main__":
    key = jax.random.PRNGKey(0)
    keys = jax.random.split(key, 8)

    # stride=1 configuration => ch_in == ch_mid == ch_out
    N, C = 2, 8
    half = C // 2

    def bn_params(k, c):
        kg, kb, km, kv = jax.random.split(k, 4)
        return (jax.random.normal(kg, (c,), dtype=jnp.float32) * 0.1 + 1.0,  # gamma
                jax.random.normal(kb, (c,), dtype=jnp.float32) * 0.1,        # beta
                jax.random.normal(km, (c,), dtype=jnp.float32) * 0.1,        # mean
                jax.random.uniform(kv, (c,), minval=0.5, maxval=1.5,
                                   dtype=jnp.float32))                       # var

    params = {
        "conv1_w": jax.random.normal(keys[1], (half, C), dtype=jnp.float32) * 0.2,
        "conv2_w": jax.random.normal(keys[2], (half, C), dtype=jnp.float32) * 0.2,
        "conv3_w": jax.random.normal(keys[3], (C, C), dtype=jnp.float32) * 0.2,
        "bn1": bn_params(keys[4], half),
        "bn2": bn_params(keys[5], half),
        "bn3": bn_params(keys[6], C),
        "se_w": jax.random.normal(keys[7], (C, C), dtype=jnp.float32) * 0.1,
        "se_b": jax.random.normal(jax.random.fold_in(key, 99), (C,),
                                  dtype=jnp.float32) * 0.1,
    }

    fwd = jax.jit(csp_res_stage_forward)

    # Case 1: HW exactly a tile multiple (no padding path).
    x = jax.random.normal(keys[0], (N, C, 16, 16), dtype=jnp.float32)
    out = jax.block_until_ready(fwd(x, params))
    np.testing.assert_allclose(np.asarray(out), np.asarray(_reference(x, params)),
                               rtol=5e-4, atol=5e-4)

    # Case 2: HW not a multiple of 128 -> exercises the padded-lane SE correction.
    x2 = jax.random.normal(jax.random.fold_in(key, 7), (N, C, 18, 18),
                           dtype=jnp.float32)
    out2 = jax.block_until_ready(fwd(x2, params))
    np.testing.assert_allclose(np.asarray(out2), np.asarray(_reference(x2, params)),
                               rtol=5e-4, atol=5e-4)

    print("KERNEL_OK")
</pallas_src>

<mosaic_0001>
module attributes {stable_mosaic.version = 11 : i64} {
  func.func @_split_conv_se_sum_kernel(%arg0: i32, %arg1: i32, %arg2: memref<1x8x256xf32, #tpu.memory_space<vmem>>, %arg3: memref<8x8xf32, #tpu.memory_space<vmem>>, %arg4: memref<8x1xf32, #tpu.memory_space<vmem>>, %arg5: memref<1x8x256xf32, #tpu.memory_space<vmem>>, %arg6: memref<1x8x1xf32, #tpu.memory_space<vmem>>) attributes {dimension_semantics = [#tpu.dimension_semantics<parallel>, #tpu.dimension_semantics<arbitrary>], iteration_bounds = array<i64: 2, 1>, scalar_prefetch = 0 : i64, scratch_operands = 0 : i64, tpu.core_type = #tpu.core_type<tc>, window_params = [{transform_indices = @transform_0, window_bounds = array<i64: 1, 8, 256>}, {pipeline_mode = #tpu.pipeline_mode<synchronous>, transform_indices = @transform_1, window_bounds = array<i64: 8, 8>}, {pipeline_mode = #tpu.pipeline_mode<synchronous>, transform_indices = @transform_2, window_bounds = array<i64: 8, 1>}, {transform_indices = @transform_3, window_bounds = array<i64: 1, 8, 256>}, {transform_indices = @transform_4, window_bounds = array<i64: 1, 8, 1>}]} {
    %c0_i32 = arith.constant 0 : i32
    %0 = arith.cmpi eq, %arg1, %c0_i32 : i32
    %1 = arith.extui %0 : i1 to i32
    %c0_i32_0 = arith.constant 0 : i32
    %2 = arith.cmpi ne, %1, %c0_i32_0 : i32
    scf.if %2 {
      %cst_18 = arith.constant 0.000000e+00 : f32
      %23 = vector.broadcast %cst_18 : f32 to vector<8x1xf32>
      %c0_19 = arith.constant 0 : index
      %c0_20 = arith.constant 0 : index
      %c0_21 = arith.constant 0 : index
      %24 = vector.load %arg6[%c0_19, %c0_20, %c0_21] : memref<1x8x1xf32, #tpu.memory_space<vmem>>, vector<1x8x1xf32>
      %25 = vector.shape_cast %24 : vector<1x8x1xf32> to vector<8x1xf32>
      %26 = vector.shape_cast %23 : vector<8x1xf32> to vector<1x8x1xf32>
      tpu.vector_store %arg6[%c0_19, %c0_20, %c0_21], %26 {strides = array<i32>} : memref<1x8x1xf32, #tpu.memory_space<vmem>>, vector<1x8x1xf32>,
    } else {
    }
    %c0 = arith.constant 0 : index
    %c0_1 = arith.constant 0 : index
    %3 = vector.load %arg3[%c0, %c0_1] : memref<8x8xf32, #tpu.memory_space<vmem>>, vector<8x8xf32>
    %c0_2 = arith.constant 0 : index
    %c0_3 = arith.constant 0 : index
    %c0_4 = arith.constant 0 : index
    %4 = vector.load %arg2[%c0_2, %c0_3, %c0_4] : memref<1x8x256xf32, #tpu.memory_space<vmem>>, vector<1x8x256xf32>
    %5 = vector.shape_cast %4 : vector<1x8x256xf32> to vector<8x256xf32>
    %cst = arith.constant dense<0.000000e+00> : vector<8x256xf32>
    %6 = tpu.matmul %3, %5, %cst {dimension_numbers = #tpu.dot_dimension_numbers<[1], [0], [0], [1], [0, 0, 1, 1], [], []>} : vector<8x8xf32>, vector<8x256xf32>, vector<8x256xf32> -> vector<8x256xf32>
    %c0_5 = arith.constant 0 : index
    %c0_6 = arith.constant 0 : index
    %7 = vector.load %arg4[%c0_5, %c0_6] : memref<8x1xf32, #tpu.memory_space<vmem>>, vector<8x1xf32>
    %8 = vector.broadcast %7 : vector<8x1xf32> to vector<8x256xf32>
    %9 = arith.addf %6, %8 : vector<8x256xf32>
    %cst_7 = arith.constant 0.000000e+00 : f32
    %10 = vector.broadcast %cst_7 : f32 to vector<8x256xf32>
    %11 = arith.maximumf %9, %10 : vector<8x256xf32>
    %c0_8 = arith.constant 0 : index
    %c0_9 = arith.constant 0 : index
    %c0_10 = arith.constant 0 : index
    %12 = vector.load %arg5[%c0_8, %c0_9, %c0_10] : memref<1x8x256xf32, #tpu.memory_space<vmem>>, vector<1x8x256xf32>
    %13 = vector.shape_cast %12 : vector<1x8x256xf32> to vector<8x256xf32>
    %14 = vector.shape_cast %11 : vector<8x256xf32> to vector<1x8x256xf32>
    tpu.vector_store %arg5[%c0_8, %c0_9, %c0_10], %14 {strides = array<i32>} : memref<1x8x256xf32, #tpu.memory_space<vmem>>, vector<1x8x256xf32>,
    %c0_11 = arith.constant 0 : index
    %c0_12 = arith.constant 0 : index
    %c0_13 = arith.constant 0 : index
    %15 = vector.load %arg6[%c0_11, %c0_12, %c0_13] : memref<1x8x1xf32, #tpu.memory_space<vmem>>, vector<1x8x1xf32>
    %16 = vector.shape_cast %15 : vector<1x8x1xf32> to vector<8x1xf32>
    %cst_14 = arith.constant dense<0.000000e+00> : vector<8xf32>
    %17 = vector.multi_reduction <add>, %11, %cst_14 [1] : vector<8x256xf32> to vector<8xf32>
    %18 = vector.shape_cast %17 : vector<8xf32> to vector<8x1xf32>
    %19 = arith.addf %16, %18 : vector<8x1xf32>
    %c0_15 = arith.constant 0 : index
    %c0_16 = arith.constant 0 : index
    %c0_17 = arith.constant 0 : index
    %20 = vector.load %arg6[%c0_15, %c0_16, %c0_17] : memref<1x8x1xf32, #tpu.memory_space<vmem>>, vector<1x8x1xf32>
    %21 = vector.shape_cast %20 : vector<1x8x1xf32> to vector<8x1xf32>
    %22 = vector.shape_cast %19 : vector<8x1xf32> to vector<1x8x1xf32>
    tpu.vector_store %arg6[%c0_15, %c0_16, %c0_17], %22 {strides = array<i32>} : memref<1x8x1xf32, #tpu.memory_space<vmem>>, vector<1x8x1xf32>,
    return
  }
  func.func @transform_0(%arg0: i32, %arg1: i32) -> (i32, i32, i32) {
    %c0_i32 = arith.constant 0 : i32
    %c0_i32_0 = arith.constant 0 : i32
    return %arg0, %c0_i32, %arg1 : i32, i32, i32
  }
  func.func @transform_1(%arg0: i32, %arg1: i32) -> (i32, i32) {
    %c0_i32 = arith.constant 0 : i32
    %c0_i32_0 = arith.constant 0 : i32
    %c0_i32_1 = arith.constant 0 : i32
    return %c0_i32, %c0_i32_0 : i32, i32
  }
  func.func @transform_2(%arg0: i32, %arg1: i32) -> (i32, i32) {
    %c0_i32 = arith.constant 0 : i32
    %c0_i32_0 = arith.constant 0 : i32
    %c0_i32_1 = arith.constant 0 : i32
    return %c0_i32, %c0_i32_0 : i32, i32
  }
  func.func @transform_3(%arg0: i32, %arg1: i32) -> (i32, i32, i32) {
    %c0_i32 = arith.constant 0 : i32
    %c0_i32_0 = arith.constant 0 : i32
    return %arg0, %c0_i32, %arg1 : i32, i32, i32
  }
  func.func @transform_4(%arg0: i32, %arg1: i32) -> (i32, i32, i32) {
    %c0_i32 = arith.constant 0 : i32
    %c0_i32_0 = arith.constant 0 : i32
    %c0_i32_1 = arith.constant 0 : i32
    return %arg0, %c0_i32, %c0_i32_0 : i32, i32, i32
  }
}

module attributes {stable_mosaic.version = 11 : i64} {
  func.func @_gated_conv_relu_kernel(%arg0: i32, %arg1: i32, %arg2: memref<1x8x256xf32, #tpu.memory_space<vmem>>, %arg3: memref<1x8x8xf32, #tpu.memory_space<vmem>>, %arg4: memref<8x1xf32, #tpu.memory_space<vmem>>, %arg5: memref<1x8x256xf32, #tpu.memory_space<vmem>>) attributes {dimension_semantics = [#tpu.dimension_semantics<parallel>, #tpu.dimension_semantics<parallel>], iteration_bounds = array<i64: 2, 1>, scalar_prefetch = 0 : i64, scratch_operands = 0 : i64, tpu.core_type = #tpu.core_type<tc>, window_params = [{transform_indices = @transform_0, window_bounds = array<i64: 1, 8, 256>}, {transform_indices = @transform_1, window_bounds = array<i64: 1, 8, 8>}, {pipeline_mode = #tpu.pipeline_mode<synchronous>, transform_indices = @transform_2, window_bounds = array<i64: 8, 1>}, {transform_indices = @transform_3, window_bounds = array<i64: 1, 8, 256>}]} {
    %c0 = arith.constant 0 : index
    %c0_0 = arith.constant 0 : index
    %c0_1 = arith.constant 0 : index
    %0 = vector.load %arg3[%c0, %c0_0, %c0_1] : memref<1x8x8xf32, #tpu.memory_space<vmem>>, vector<1x8x8xf32>
    %1 = vector.shape_cast %0 : vector<1x8x8xf32> to vector<8x8xf32>
    %c0_2 = arith.constant 0 : index
    %c0_3 = arith.constant 0 : index
    %c0_4 = arith.constant 0 : index
    %2 = vector.load %arg2[%c0_2, %c0_3, %c0_4] : memref<1x8x256xf32, #tpu.memory_space<vmem>>, vector<1x8x256xf32>
    %3 = vector.shape_cast %2 : vector<1x8x256xf32> to vector<8x256xf32>
    %cst = arith.constant dense<0.000000e+00> : vector<8x256xf32>
    %4 = tpu.matmul %1, %3, %cst {dimension_numbers = #tpu.dot_dimension_numbers<[1], [0], [0], [1], [0, 0, 1, 1], [], []>} : vector<8x8xf32>, vector<8x256xf32>, vector<8x256xf32> -> vector<8x256xf32>
    %c0_5 = arith.constant 0 : index
    %c0_6 = arith.constant 0 : index
    %5 = vector.load %arg4[%c0_5, %c0_6] : memref<8x1xf32, #tpu.memory_space<vmem>>, vector<8x1xf32>
    %6 = vector.broadcast %5 : vector<8x1xf32> to vector<8x256xf32>
    %7 = arith.addf %4, %6 : vector<8x256xf32>
    %cst_7 = arith.constant 0.000000e+00 : f32
    %8 = vector.broadcast %cst_7 : f32 to vector<8x256xf32>
    %9 = arith.maximumf %7, %8 : vector<8x256xf32>
    %c0_8 = arith.constant 0 : index
    %c0_9 = arith.constant 0 : index
    %c0_10 = arith.constant 0 : index
    %10 = vector.load %arg5[%c0_8, %c0_9, %c0_10] : memref<1x8x256xf32, #tpu.memory_space<vmem>>, vector<1x8x256xf32>
    %11 = vector.shape_cast %10 : vector<1x8x256xf32> to vector<8x256xf32>
    %12 = vector.shape_cast %9 : vector<8x256xf32> to vector<1x8x256xf32>
    tpu.vector_store %arg5[%c0_8, %c0_9, %c0_10], %12 {strides = array<i32>} : memref<1x8x256xf32, #tpu.memory_space<vmem>>, vector<1x8x256xf32>,
    return
  }
  func.func @transform_0(%arg0: i32, %arg1: i32) -> (i32, i32, i32) {
    %c0_i32 = arith.constant 0 : i32
    %c0_i32_0 = arith.constant 0 : i32
    return %arg0, %c0_i32, %arg1 : i32, i32, i32
  }
  func.func @transform_1(%arg0: i32, %arg1: i32) -> (i32, i32, i32) {
    %c0_i32 = arith.constant 0 : i32
    %c0_i32_0 = arith.constant 0 : i32
    %c0_i32_1 = arith.constant 0 : i32
    return %arg0, %c0_i32, %c0_i32_0 : i32, i32, i32
  }
  func.func @transform_2(%arg0: i32, %arg1: i32) -> (i32, i32) {
    %c0_i32 = arith.constant 0 : i32
    %c0_i32_0 = arith.constant 0 : i32
    %c0_i32_1 = arith.constant 0 : i32
    return %c0_i32, %c0_i32_0 : i32, i32
  }
  func.func @transform_3(%arg0: i32, %arg1: i32) -> (i32, i32, i32) {
    %c0_i32 = arith.constant 0 : i32
    %c0_i32_0 = arith.constant 0 : i32
    return %arg0, %c0_i32, %arg1 : i32, i32, i32
  }
}

</mosaic_0001>

<llo_original>
// kernel: csp_res_stage_forward.2
$region0: #{csp_res_stage_forward.2}
  #allocation0 [shape = 'u32[]', space=smem, size = 0x4, offset = 0x4, fixed_abs, tag = 'smem constant byte address 0x4 - core index']
  #allocation1 [shape = 'u32[72,128]{1,0:T(1,128)}', space=vmem, size = 0x9000, scoped, tag = 'internal scratch']
  %s0 = inlined_call_operand.vmem [shape: f32[2,8,256], index: 0, kind: input, shape index: {}]
  %s1 = inlined_call_operand.vmem [shape: f32[8,8], index: 1, kind: input, shape index: {}]
  %s2 = inlined_call_operand.vmem [shape: f32[8,1], index: 2, kind: input, shape index: {}]
  %s3 = inlined_call_operand.vmem [shape: f32[2,8,256], index: 3, kind: output, shape index: {0}]
  %s4 = inlined_call_operand.vmem [shape: f32[2,8,1], index: 4, kind: output, shape index: {1}]
  %5 = xla_tuple %s3, %s4
  %s6 = sld [smem:[#allocation0]]
  $region57: #{csp_res_stage_forward.2} parent=0
    _
  %s8 = ssub.s32 1, %s6
  %s9 = scalar_select 0, %s8, %s6
  loop: start=0, step=1, limit=4
  $region2: #{csp_res_stage_forward.2} parent=0 // loop_pre_header
    _
  $region3: #{csp_res_stage_forward.2} parent=0 // loop_header
    %s11 = sphi 0, %s15
    %p12 = scmp.ge.s32.totalorder %s11, 4
    %s18 = sphi 0, %s30
    %s19 = sphi 0, %s26
    %s20 = sphi 0, %s18
    %s21 = sphi 0, %s19
    %s22 = sphi 0, %s20
    %s23 = sphi 0, %s21
    %s35 = sphi 0, %s37
    %s38 = sphi 0, %s35
    %s39 = sphi 0, %s38
    %s55 = sphi 0, %s39
    %s59 = sphi 0, %s59
    %s61 = sphi 0, %s59
    %s62 = sphi 0, %s61
    %s76 = sphi 0, %s62
    %s80 = sphi 0, %s80
    %s82 = sphi 0, %s80
    %s83 = sphi 0, %s82
    %s97 = sphi 0, %s83
    %s105 = sphi 0, %s107
    %s108 = sphi 0, %s105
    %s109 = sphi 0, %s108
    %s125 = sphi 0, %s109
    %s131 = sphi 0, %s133
    %s134 = sphi 0, %s131
    %s135 = sphi 0, %s134
    %s151 = sphi 0, %s135
  $region4: #{csp_res_stage_forward.2} parent=0 // loop_header_branch
    %14 = sbr.rel (%p12) target = $region8
  $region5: #{csp_res_stage_forward.2} parent=0 // loop_body
    %s16 = ssub.s32 %s11, 1
    %s17 = ssub.s32 %s11, 2
    %s24 = sadd.s32 1, %s19
    %p25 = scmp.ge.s32.totalorder %s24, 1
    %s26 = scalar_select %p25, 0, %s24
    %s27 = sadd.s32 1, %s18
    %s28 = scalar_select %p25, %s27, %s18
    %p29 = scmp.ge.s32.totalorder %s28, 2
    %s30 = scalar_select %p29, 0, %s28
    %s31 = ssub.s32 %s18, %s30
    %s32 = ssub.s32 %s19, %s26
    %s33 = sor.u32 %s31, %s32
    %p34 = scmp.eq.s32.totalorder %s33, 0
    %s36 = sadd.s32 %s35, 1
    %s37 = scalar_select %p34, %s35, %s36
    %p40 = pneg %p34
    %p41 = scmp.eq.s32.totalorder %s11, 1
    %p42 = por %p40, %p41
    %p43 = scmp.ne.s32.totalorder %s35, %s38
    %p44 = scmp.eq.s32.totalorder %s11, 0
    %p45 = por %p43, %p44
    %p46 = scmp.ne.s32.totalorder %s35, %s38
    %p47 = scmp.eq.s32.totalorder %s16, 1
    %p48 = por %p46, %p47
    %p49 = scmp.ne.s32.totalorder %s38, %s39
    %p50 = scmp.eq.s32.totalorder %s16, 0
    %p51 = por %p49, %p50
    %p52 = scmp.ne.s32.totalorder %s38, %s39
    %p53 = scmp.eq.s32.totalorder %s17, 1
    %p54 = por %p52, %p53
    %p56 = scmp.ne.s32.totalorder %s39, %s55
    %p57 = scmp.eq.s32.totalorder %s17, 0
    %p58 = por %p56, %p57
    %s60 = sadd.s32 %s59, 1
    %p63 = scmp.eq.s32.totalorder %s11, 1
    %p64 = scmp.ne.s32.totalorder %s59, %s61
    %p65 = scmp.eq.s32.totalorder %s11, 0
    %p66 = por %p64, %p65
    %p67 = scmp.ne.s32.totalorder %s59, %s61
    %p68 = scmp.eq.s32.totalorder %s16, 1
    %p69 = por %p67, %p68
    %p70 = scmp.ne.s32.totalorder %s61, %s62
    %p71 = scmp.eq.s32.totalorder %s16, 0
    %p72 = por %p70, %p71
    %p73 = scmp.ne.s32.totalorder %s61, %s62
    %p74 = scmp.eq.s32.totalorder %s17, 1
    %p75 = por %p73, %p74
    %p77 = scmp.ne.s32.totalorder %s62, %s76
    %p78 = scmp.eq.s32.totalorder %s17, 0
    %p79 = por %p77, %p78
    %s81 = sadd.s32 %s80, 1
    %p84 = scmp.eq.s32.totalorder %s11, 1
    %p85 = scmp.ne.s32.totalorder %s80, %s82
    %p86 = scmp.eq.s32.totalorder %s11, 0
    %p87 = por %p85, %p86
    %p88 = scmp.ne.s32.totalorder %s80, %s82
    %p89 = scmp.eq.s32.totalorder %s16, 1
    %p90 = por %p88, %p89
    %p91 = scmp.ne.s32.totalorder %s82, %s83
    %p92 = scmp.eq.s32.totalorder %s16, 0
    %p93 = por %p91, %p92
    %p94 = scmp.ne.s32.totalorder %s82, %s83
    %p95 = scmp.eq.s32.totalorder %s17, 1
    %p96 = por %p94, %p95
    %p98 = scmp.ne.s32.totalorder %s83, %s97
    %p99 = scmp.eq.s32.totalorder %s17, 0
    %p100 = por %p98, %p99
    %s101 = ssub.s32 %s18, %s30
    %s102 = ssub.s32 %s19, %s26
    %s103 = sor.u32 %s101, %s102
    %p104 = scmp.eq.s32.totalorder %s103, 0
    %s106 = sadd.s32 %s105, 1
    %s107 = scalar_select %p104, %s105, %s106
    %p110 = pneg %p104
    %p111 = scmp.eq.s32.totalorder %s11, 1
    %p112 = por %p110, %p111
    %p113 = scmp.ne.s32.totalorder %s105, %s108
    %p114 = scmp.eq.s32.totalorder %s11, 0
    %p115 = por %p113, %p114
    %p116 = scmp.ne.s32.totalorder %s105, %s108
    %p117 = scmp.eq.s32.totalorder %s16, 1
    %p118 = por %p116, %p117
    %p119 = scmp.ne.s32.totalorder %s108, %s109
    %p120 = scmp.eq.s32.totalorder %s16, 0
    %p121 = por %p119, %p120
    %p122 = scmp.ne.s32.totalorder %s108, %s109
    %p123 = scmp.eq.s32.totalorder %s17, 1
    %p124 = por %p122, %p123
    %p126 = scmp.ne.s32.totalorder %s109, %s125
    %p127 = scmp.eq.s32.totalorder %s17, 0
    %p128 = por %p126, %p127
    %s129 = ssub.s32 %s18, %s30
    %p130 = scmp.eq.s32.totalorder %s129, 0
    %s132 = sadd.s32 %s131, 1
    %s133 = scalar_select %p130, %s131, %s132
    %p136 = pneg %p130
    %p137 = scmp.eq.s32.totalorder %s11, 1
    %p138 = por %p136, %p137
    %p139 = scmp.ne.s32.totalorder %s131, %s134
    %p140 = scmp.eq.s32.totalorder %s11, 0
    %p141 = por %p139, %p140
    %p142 = scmp.ne.s32.totalorder %s131, %s134
    %p143 = scmp.eq.s32.totalorder %s16, 1
    %p144 = por %p142, %p143
    %p145 = scmp.ne.s32.totalorder %s134, %s135
    %p146 = scmp.eq.s32.totalorder %s16, 0
    %p147 = por %p145, %p146
    %p148 = scmp.ne.s32.totalorder %s134, %s135
    %p149 = scmp.eq.s32.totalorder %s17, 1
    %p150 = por %p148, %p149
    %p152 = scmp.ne.s32.totalorder %s135, %s151
    %p153 = scmp.eq.s32.totalorder %s17, 0
    %p154 = por %p152, %p153
    %p155 = scmp.le.s32.totalorder 1, %s11
    %p156 = scmp.lt.s32.totalorder %s11, 3
    %p157 = pnand %p155, %p156
    %p158 = pneg %p157
    // Predicated region
    $region9: #{csp_res_stage_forward.2} parent=5 // pred_check
      _
    $region10: #{csp_res_stage_forward.2} parent=5 // pred_check_branch
      %160 = sbr.rel (%p157) target = $region12
    $region11: #{csp_res_stage_forward.2} parent=5 // pred_region
      %s161 = ssub.s32 %s11, 1
      // Predicated region
      $region13: #{csp_res_stage_forward.2} parent=11 // pred_check
        %p162 = pneg %p72
      $region14: #{csp_res_stage_forward.2} parent=11 // pred_check_branch
        %164 = sbr.rel (%p162) target = $region16
      $region15: #{csp_res_stage_forward.2} parent=11 // pred_region
        _
      $region16: #{csp_res_stage_forward.2} parent=11 // pred_fallthru
        _
      // Predicated region
      $region17: #{csp_res_stage_forward.2} parent=11 // pred_check
        %p165 = pneg %p93
      $region18: #{csp_res_stage_forward.2} parent=11 // pred_check_branch
        %167 = sbr.rel (%p165) target = $region20
      $region19: #{csp_res_stage_forward.2} parent=11 // pred_region
        _
      $region20: #{csp_res_stage_forward.2} parent=11 // pred_fallthru
        _
    $region12: #{csp_res_stage_forward.2} parent=5 // pred_fallthru
      _
    %p168 = scmp.lt.s32.totalorder %s11, 2
    // Predicated region
    $region21: #{csp_res_stage_forward.2} parent=5 // pred_check
      %p169 = pneg %p168
    $region22: #{csp_res_stage_forward.2} parent=5 // pred_check_branch
      %171 = sbr.rel (%p169) target = $region24
    $region23: #{csp_res_stage_forward.2} parent=5 // pred_region
      // Predicated region
      $region25: #{csp_res_stage_forward.2} parent=23 // pred_check
        %p172 = pneg %p45
      $region26: #{csp_res_stage_forward.2} parent=23 // pred_check_branch
        %174 = sbr.rel (%p172) target = $region28
      $region27: #{csp_res_stage_forward.2} parent=23 // pred_region
        %s175 = smul.u32 2, %s19
        %p176 = scmp.lt.s32.totalorder %s18, 1
        %s177 = scalar_select %p176, %s18, 1
        %p178 = scmp.lt.s32.totalorder %s175, 1
        %s179 = scalar_select %p178, %s175, 1
        %s180 = smul.addr %s177, 2
        %s181 = sadd.s32 %s179, %s180
        %s182 = smul.addr %s181, 8
        %s183 = scalar_lea.vmem %s0, %s182
        %s184 = smul.u32 2, %s19
      $region28: #{csp_res_stage_forward.2} parent=23 // pred_fallthru
        _
    $region24: #{csp_res_stage_forward.2} parent=5 // pred_fallthru
      _
    %p185 = scmp.le.s32.totalorder 1, %s11
    %p186 = scmp.lt.s32.totalorder %s11, 3
    %p187 = pnand %p185, %p186
    %p188 = pneg %p187
    // Predicated region
    $region29: #{csp_res_stage_forward.2} parent=5 // pred_check
      _
    $region30: #{csp_res_stage_forward.2} parent=5 // pred_check_branch
      %190 = sbr.rel (%p187) target = $region32
    $region31: #{csp_res_stage_forward.2} parent=5 // pred_region
      %s191 = ssub.s32 %s11, 1
      %s192 = smul.u32 2, %s21
      %p193 = scmp.lt.s32.totalorder %s20, 1
      %s194 = scalar_select %p193, %s20, 1
      %p195 = scmp.lt.s32.totalorder %s192, 1
      %s196 = scalar_select %p195, %s192, 1
      %s197 = smul.addr %s194, 2
      %s198 = sadd.s32 %s196, %s197
      %s199 = smul.addr %s198, 8
      %s200 = scalar_lea.vmem %s0, %s199
      %p201 = pneg %p51
      %p202 = pneg %p48
      %p203 = pneg %p72
      %p204 = pneg %p69
      %p205 = pneg %p93
      %p206 = pneg %p90
      %p207 = pneg %p121
      %p208 = pneg %p118
      %s209 = smul.u32 2, %s21
      %p210 = scmp.lt.s32.totalorder %s20, 1
      %s211 = scalar_select %p210, %s20, 1
      %p212 = scmp.lt.s32.totalorder %s209, 1
      %s213 = scalar_select %p212, %s209, 1
      %s214 = smul.addr %s211, 2
      %s215 = sadd.s32 %s213, %s214
      %s216 = smul.addr %s215, 8
      %s217 = scalar_lea.vmem %s3, %s216
      %p218 = pneg %p147
      %p219 = pneg %p144
      %p220 = scmp.lt.s32.totalorder %s20, 1
      %s221 = scalar_select %p220, %s20, 1
      %s222 = smul.addr %s221, 8
      %s223 = scalar_lea.vmem %s4, %s222
      %s224 = smul.u32 2, %s21
      %p225 = scmp.lt.s32.totalorder %s20, 1
      %s226 = scalar_select %p225, %s20, 1
      %p227 = scmp.lt.s32.totalorder %s224, 1
      %s228 = scalar_select %p227, %s224, 1
      %s229 = smul.addr %s226, 2
      %s230 = sadd.s32 %s228, %s229
      %s231 = smul.addr %s230, 8
      %s232 = scalar_lea.vmem %s0, %s231
      %s233 = smul.u32 2, %s21
      %s234 = smul.u32 2, %s21
      %p235 = scmp.lt.s32.totalorder %s20, 1
      %s236 = scalar_select %p235, %s20, 1
      %p237 = scmp.lt.s32.totalorder %s234, 1
      %s238 = scalar_select %p237, %s234, 1
      %s239 = smul.addr %s236, 2
      %s240 = sadd.s32 %s238, %s239
      %s241 = smul.addr %s240, 8
      %s242 = scalar_lea.vmem %s3, %s241
      %s243 = smul.u32 2, %s21
      %p244 = scmp.lt.s32.totalorder %s20, 1
      %s245 = scalar_select %p244, %s20, 1
      %s246 = smul.addr %s245, 8
      %s247 = scalar_lea.vmem %s4, %s246
      %p248 = scmp.eq.s32.totalorder %s21, 0
      // Predicated region
      $region33: #{csp_res_stage_forward.2} parent=31 // pred_check
        %p249 = pneg %p248
      $region34: #{csp_res_stage_forward.2} parent=31 // pred_check_branch
        %251 = sbr.rel (%p249) target = $region36
      $region35: #{csp_res_stage_forward.2} parent=31 // pred_region
        %vm252 = vcmask 7168
        %253 = vst.msk [vmem:[%s247] sm:$0xff] %vm252, 0.0
      $region36: #{csp_res_stage_forward.2} parent=31 // pred_fallthru
        _
      %v254 = vld [vmem:[%s1] sm:$0xff]
      %v255 = vld [vmem:[%s232] sm:$0xff]
      %v256 = vld [vmem:[%s232 + $0x8] sm:$0xff]
      %v257 = vld [vmem:[%s2] sm:$0xff]
      %259 = vset.pattern.permute.xlu0 0
      %260 = vperm.xlu0 %259, %v257
      %v261 = vpop.permute.xlu0 %260
      %vm263 = vcmask 64512
      %v265 = vsel %vm263, %v254, 0
      %267 = vmatpush.msra.mxu0 0.0
      %268 = vmatpush.msra.mxu0 0.0
      %269 = vmatpush.msra.mxu0 0.0
      %270 = vmatpush.msra.mxu0 0.0
      %271 = vmatpush.msra.mxu0 0.0
      %272 = vmatpush.msra.mxu0 0.0
      %273 = vmatpush.msra.mxu0 0.0
      %274 = vmatpush.msra.mxu0 0.0
      %275 = vmatpush.msra.mxu0 0.0
      %276 = vmatpush.msra.mxu0 0.0
      %277 = vmatpush.msra.mxu0 0.0
      %278 = vmatpush.msra.mxu0 0.0
      %279 = vmatpush.msra.mxu0 0.0
      %280 = vmatpush.msra.mxu0 0.0
      %281 = vmatpush.msra.mxu0 0.0
      %282 = vmatpush.msra.mxu0 %v255
      %283 = vmatmul.f32.gmra.mxu0 %v265
      %v284 = vpop.f32.mrf.mxu0
      %v285 = vadd.f32 %v261, %v284
      %286 = vdwg.mxu0
      %287 = vmatpush.msra.mxu0 0.0
      %288 = vmatpush.msra.mxu0 0.0
      %289 = vmatpush.msra.mxu0 0.0
      %290 = vmatpush.msra.mxu0 0.0
      %291 = vmatpush.msra.mxu0 0.0
      %292 = vmatpush.msra.mxu0 0.0
      %293 = vmatpush.msra.mxu0 0.0
      %294 = vmatpush.msra.mxu0 0.0
      %295 = vmatpush.msra.mxu0 0.0
      %296 = vmatpush.msra.mxu0 0.0
      %297 = vmatpush.msra.mxu0 0.0
      %298 = vmatpush.msra.mxu0 0.0
      %299 = vmatpush.msra.mxu0 0.0
      %300 = vmatpush.msra.mxu0 0.0
      %301 = vmatpush.msra.mxu0 0.0
      %302 = vmatpush.msra.mxu0 %v256
      %303 = vmatmul.f32.gmra.mxu0 %v265
      %v304 = vpop.f32.mrf.mxu0
      %v305 = vadd.f32 %v261, %v304
      %306 = vdwg.mxu0
      %v307 = vmax.f32 %v285, 0.0
      %v308 = vmax.f32 %v305, 0.0
      %309 = vst [vmem:[%s242] sm:$0xff] %v307
      %310 = vst [vmem:[%s242 + $0x8] sm:$0xff] %v308
      %v311 = vld [vmem:[%s247] sm:$0xff]
      %v312 = vadd.f32 %v307, %v308
      %313 = vadd.xlane.f32.xlu0 %v312
      %v314 = vpop.xlane.xlu0 %313
      %v315 = vadd.f32 %v311, %v314
      %vm316 = vcmask 7168
      %317 = vst.msk [vmem:[%s247] sm:$0xff] %vm316, %v315
      %s318 = smul.u32 2, %s21
      %p319 = scmp.lt.s32.totalorder %s20, 1
      %s320 = scalar_select %p319, %s20, 1
      %p321 = scmp.lt.s32.totalorder %s318, 1
      %s322 = scalar_select %p321, %s318, 1
      %s323 = smul.addr %s320, 2
      %s324 = sadd.s32 %s322, %s323
      %s325 = smul.addr %s324, 8
      %s326 = scalar_lea.vmem %s3, %s325
      %p327 = scmp.lt.s32.totalorder %s20, 1
      %s328 = scalar_select %p327, %s20, 1
      %s329 = smul.addr %s328, 8
      %s330 = scalar_lea.vmem %s4, %s329
      // Predicated region
      $region37: #{csp_res_stage_forward.2} parent=31 // pred_check
        %p331 = pneg %p118
      $region38: #{csp_res_stage_forward.2} parent=31 // pred_check_branch
        %333 = sbr.rel (%p331) target = $region40
      $region39: #{csp_res_stage_forward.2} parent=31 // pred_region
        %s334 = smul.u32 2, %s21
      $region40: #{csp_res_stage_forward.2} parent=31 // pred_fallthru
        _
      // Predicated region
      $region41: #{csp_res_stage_forward.2} parent=31 // pred_check
        %p335 = pneg %p144
      $region42: #{csp_res_stage_forward.2} parent=31 // pred_check_branch
        %337 = sbr.rel (%p335) target = $region44
      $region43: #{csp_res_stage_forward.2} parent=31 // pred_region
        _
      $region44: #{csp_res_stage_forward.2} parent=31 // pred_fallthru
        _
    $region32: #{csp_res_stage_forward.2} parent=5 // pred_fallthru
      _
    %p338 = scmp.le.s32.totalorder 2, %s11
    // Predicated region
    $region45: #{csp_res_stage_forward.2} parent=5 // pred_check
      %p339 = pneg %p338
    $region46: #{csp_res_stage_forward.2} parent=5 // pred_check_branch
      %341 = sbr.rel (%p339) target = $region48
    $region47: #{csp_res_stage_forward.2} parent=5 // pred_region
      %s342 = ssub.s32 %s11, 2
      // Predicated region
      $region49: #{csp_res_stage_forward.2} parent=47 // pred_check
        %p343 = pneg %p124
      $region50: #{csp_res_stage_forward.2} parent=47 // pred_check_branch
        %345 = sbr.rel (%p343) target = $region52
      $region51: #{csp_res_stage_forward.2} parent=47 // pred_region
        %s346 = smul.u32 2, %s23
        %p347 = scmp.lt.s32.totalorder %s22, 1
        %s348 = scalar_select %p347, %s22, 1
        %p349 = scmp.lt.s32.totalorder %s346, 1
        %s350 = scalar_select %p349, %s346, 1
        %s351 = smul.addr %s348, 2
        %s352 = sadd.s32 %s350, %s351
        %s353 = smul.addr %s352, 8
        %s354 = scalar_lea.vmem %s3, %s353
      $region52: #{csp_res_stage_forward.2} parent=47 // pred_fallthru
        _
      // Predicated region
      $region53: #{csp_res_stage_forward.2} parent=47 // pred_check
        %p355 = pneg %p150
      $region54: #{csp_res_stage_forward.2} parent=47 // pred_check_branch
        %357 = sbr.rel (%p355) target = $region56
      $region55: #{csp_res_stage_forward.2} parent=47 // pred_region
        %p358 = scmp.lt.s32.totalorder %s22, 1
        %s359 = scalar_select %p358, %s22, 1
        %s360 = smul.addr %s359, 8
        %s361 = scalar_lea.vmem %s4, %s360
      $region56: #{csp_res_stage_forward.2} parent=47 // pred_fallthru
        _
    $region48: #{csp_res_stage_forward.2} parent=5 // pred_fallthru
      _
  $region6: #{csp_res_stage_forward.2} parent=0 // loop_footer
    %s15 = sadd.s32 1, %s11
  $region7: #{csp_res_stage_forward.2} parent=0 // loop_footer_branch
    %10 = sbr.rel target = $region3
  $region8: #{csp_res_stage_forward.2} parent=0 // loop_exit
    _

// kernel: csp_res_stage_forward.3
$region0: #{csp_res_stage_forward.3}
  #allocation0 [shape = 'u32[]', space=smem, size = 0x4, offset = 0x4, fixed_abs, tag = 'smem constant byte address 0x4 - core index']
  #allocation1 [shape = 'u32[72,128]{1,0:T(1,128)}', space=vmem, size = 0x9000, scoped, tag = 'internal scratch']
  %s0 = inlined_call_operand.vmem [shape: f32[2,8,256], index: 0, kind: input, shape index: {}]
  %s1 = inlined_call_operand.vmem [shape: f32[2,8,8], index: 1, kind: input, shape index: {}]
  %s2 = inlined_call_operand.vmem [shape: f32[8,1], index: 2, kind: input, shape index: {}]
  %s3 = inlined_call_operand.vmem [shape: f32[2,8,256], index: 3, kind: output, shape index: {}]
  %s4 = sld [smem:[#allocation0]]
  $region45: #{csp_res_stage_forward.3} parent=0
    _
  %s6 = ssub.s32 1, %s4
  %s7 = scalar_select 0, %s6, %s4
  loop: start=0, step=1, limit=4
  $region2: #{csp_res_stage_forward.3} parent=0 // loop_pre_header
    _
  $region3: #{csp_res_stage_forward.3} parent=0 // loop_header
    %s9 = sphi 0, %s13
    %p10 = scmp.ge.s32.totalorder %s9, 4
    %s16 = sphi 0, %s28
    %s17 = sphi 0, %s24
    %s18 = sphi 0, %s16
    %s19 = sphi 0, %s17
    %s20 = sphi 0, %s18
    %s21 = sphi 0, %s19
    %s33 = sphi 0, %s35
    %s36 = sphi 0, %s33
    %s37 = sphi 0, %s36
    %s53 = sphi 0, %s37
    %s59 = sphi 0, %s61
    %s62 = sphi 0, %s59
    %s63 = sphi 0, %s62
    %s79 = sphi 0, %s63
    %s83 = sphi 0, %s83
    %s85 = sphi 0, %s83
    %s86 = sphi 0, %s85
    %s100 = sphi 0, %s86
    %s108 = sphi 0, %s110
    %s111 = sphi 0, %s108
    %s112 = sphi 0, %s111
    %s128 = sphi 0, %s112
  $region4: #{csp_res_stage_forward.3} parent=0 // loop_header_branch
    %12 = sbr.rel (%p10) target = $region8
  $region5: #{csp_res_stage_forward.3} parent=0 // loop_body
    %s14 = ssub.s32 %s9, 1
    %s15 = ssub.s32 %s9, 2
    %s22 = sadd.s32 1, %s17
    %p23 = scmp.ge.s32.totalorder %s22, 1
    %s24 = scalar_select %p23, 0, %s22
    %s25 = sadd.s32 1, %s16
    %s26 = scalar_select %p23, %s25, %s16
    %p27 = scmp.ge.s32.totalorder %s26, 2
    %s28 = scalar_select %p27, 0, %s26
    %s29 = ssub.s32 %s16, %s28
    %s30 = ssub.s32 %s17, %s24
    %s31 = sor.u32 %s29, %s30
    %p32 = scmp.eq.s32.totalorder %s31, 0
    %s34 = sadd.s32 %s33, 1
    %s35 = scalar_select %p32, %s33, %s34
    %p38 = pneg %p32
    %p39 = scmp.eq.s32.totalorder %s9, 1
    %p40 = por %p38, %p39
    %p41 = scmp.ne.s32.totalorder %s33, %s36
    %p42 = scmp.eq.s32.totalorder %s9, 0
    %p43 = por %p41, %p42
    %p44 = scmp.ne.s32.totalorder %s33, %s36
    %p45 = scmp.eq.s32.totalorder %s14, 1
    %p46 = por %p44, %p45
    %p47 = scmp.ne.s32.totalorder %s36, %s37
    %p48 = scmp.eq.s32.totalorder %s14, 0
    %p49 = por %p47, %p48
    %p50 = scmp.ne.s32.totalorder %s36, %s37
    %p51 = scmp.eq.s32.totalorder %s15, 1
    %p52 = por %p50, %p51
    %p54 = scmp.ne.s32.totalorder %s37, %s53
    %p55 = scmp.eq.s32.totalorder %s15, 0
    %p56 = por %p54, %p55
    %s57 = ssub.s32 %s16, %s28
    %p58 = scmp.eq.s32.totalorder %s57, 0
    %s60 = sadd.s32 %s59, 1
    %s61 = scalar_select %p58, %s59, %s60
    %p64 = pneg %p58
    %p65 = scmp.eq.s32.totalorder %s9, 1
    %p66 = por %p64, %p65
    %p67 = scmp.ne.s32.totalorder %s59, %s62
    %p68 = scmp.eq.s32.totalorder %s9, 0
    %p69 = por %p67, %p68
    %p70 = scmp.ne.s32.totalorder %s59, %s62
    %p71 = scmp.eq.s32.totalorder %s14, 1
    %p72 = por %p70, %p71
    %p73 = scmp.ne.s32.totalorder %s62, %s63
    %p74 = scmp.eq.s32.totalorder %s14, 0
    %p75 = por %p73, %p74
    %p76 = scmp.ne.s32.totalorder %s62, %s63
    %p77 = scmp.eq.s32.totalorder %s15, 1
    %p78 = por %p76, %p77
    %p80 = scmp.ne.s32.totalorder %s63, %s79
    %p81 = scmp.eq.s32.totalorder %s15, 0
    %p82 = por %p80, %p81
    %s84 = sadd.s32 %s83, 1
    %p87 = scmp.eq.s32.totalorder %s9, 1
    %p88 = scmp.ne.s32.totalorder %s83, %s85
    %p89 = scmp.eq.s32.totalorder %s9, 0
    %p90 = por %p88, %p89
    %p91 = scmp.ne.s32.totalorder %s83, %s85
    %p92 = scmp.eq.s32.totalorder %s14, 1
    %p93 = por %p91, %p92
    %p94 = scmp.ne.s32.totalorder %s85, %s86
    %p95 = scmp.eq.s32.totalorder %s14, 0
    %p96 = por %p94, %p95
    %p97 = scmp.ne.s32.totalorder %s85, %s86
    %p98 = scmp.eq.s32.totalorder %s15, 1
    %p99 = por %p97, %p98
    %p101 = scmp.ne.s32.totalorder %s86, %s100
    %p102 = scmp.eq.s32.totalorder %s15, 0
    %p103 = por %p101, %p102
    %s104 = ssub.s32 %s16, %s28
    %s105 = ssub.s32 %s17, %s24
    %s106 = sor.u32 %s104, %s105
    %p107 = scmp.eq.s32.totalorder %s106, 0
    %s109 = sadd.s32 %s108, 1
    %s110 = scalar_select %p107, %s108, %s109
    %p113 = pneg %p107
    %p114 = scmp.eq.s32.totalorder %s9, 1
    %p115 = por %p113, %p114
    %p116 = scmp.ne.s32.totalorder %s108, %s111
    %p117 = scmp.eq.s32.totalorder %s9, 0
    %p118 = por %p116, %p117
    %p119 = scmp.ne.s32.totalorder %s108, %s111
    %p120 = scmp.eq.s32.totalorder %s14, 1
    %p121 = por %p119, %p120
    %p122 = scmp.ne.s32.totalorder %s111, %s112
    %p123 = scmp.eq.s32.totalorder %s14, 0
    %p124 = por %p122, %p123
    %p125 = scmp.ne.s32.totalorder %s111, %s112
    %p126 = scmp.eq.s32.totalorder %s15, 1
    %p127 = por %p125, %p126
    %p129 = scmp.ne.s32.totalorder %s112, %s128
    %p130 = scmp.eq.s32.totalorder %s15, 0
    %p131 = por %p129, %p130
    %p132 = scmp.le.s32.totalorder 1, %s9
    %p133 = scmp.lt.s32.totalorder %s9, 3
    %p134 = pnand %p132, %p133
    %p135 = pneg %p134
    // Predicated region
    $region9: #{csp_res_stage_forward.3} parent=5 // pred_check
      _
    $region10: #{csp_res_stage_forward.3} parent=5 // pred_check_branch
      %137 = sbr.rel (%p134) target = $region12
    $region11: #{csp_res_stage_forward.3} parent=5 // pred_region
      %s138 = ssub.s32 %s9, 1
      // Predicated region
      $region13: #{csp_res_stage_forward.3} parent=11 // pred_check
        %p139 = pneg %p96
      $region14: #{csp_res_stage_forward.3} parent=11 // pred_check_branch
        %141 = sbr.rel (%p139) target = $region16
      $region15: #{csp_res_stage_forward.3} parent=11 // pred_region
        _
      $region16: #{csp_res_stage_forward.3} parent=11 // pred_fallthru
        _
    $region12: #{csp_res_stage_forward.3} parent=5 // pred_fallthru
      _
    %p142 = scmp.lt.s32.totalorder %s9, 2
    // Predicated region
    $region17: #{csp_res_stage_forward.3} parent=5 // pred_check
      %p143 = pneg %p142
    $region18: #{csp_res_stage_forward.3} parent=5 // pred_check_branch
      %145 = sbr.rel (%p143) target = $region20
    $region19: #{csp_res_stage_forward.3} parent=5 // pred_region
      // Predicated region
      $region21: #{csp_res_stage_forward.3} parent=19 // pred_check
        %p146 = pneg %p43
      $region22: #{csp_res_stage_forward.3} parent=19 // pred_check_branch
        %148 = sbr.rel (%p146) target = $region24
      $region23: #{csp_res_stage_forward.3} parent=19 // pred_region
        %s149 = smul.u32 2, %s17
        %p150 = scmp.lt.s32.totalorder %s16, 1
        %s151 = scalar_select %p150, %s16, 1
        %p152 = scmp.lt.s32.totalorder %s149, 1
        %s153 = scalar_select %p152, %s149, 1
        %s154 = smul.addr %s151, 2
        %s155 = sadd.s32 %s153, %s154
        %s156 = smul.addr %s155, 8
        %s157 = scalar_lea.vmem %s0, %s156
        %s158 = smul.u32 2, %s17
      $region24: #{csp_res_stage_forward.3} parent=19 // pred_fallthru
        _
      // Predicated region
      $region25: #{csp_res_stage_forward.3} parent=19 // pred_check
        %p159 = pneg %p69
      $region26: #{csp_res_stage_forward.3} parent=19 // pred_check_branch
        %161 = sbr.rel (%p159) target = $region28
      $region27: #{csp_res_stage_forward.3} parent=19 // pred_region
        %p162 = scmp.lt.s32.totalorder %s16, 1
        %s163 = scalar_select %p162, %s16, 1
        %s164 = smul.addr %s163, 8
        %s165 = scalar_lea.vmem %s1, %s164
      $region28: #{csp_res_stage_forward.3} parent=19 // pred_fallthru
        _
    $region20: #{csp_res_stage_forward.3} parent=5 // pred_fallthru
      _
    %p166 = scmp.le.s32.totalorder 1, %s9
    %p167 = scmp.lt.s32.totalorder %s9, 3
    %p168 = pnand %p166, %p167
    %p169 = pneg %p168
    // Predicated region
    $region29: #{csp_res_stage_forward.3} parent=5 // pred_check
      _
    $region30: #{csp_res_stage_forward.3} parent=5 // pred_check_branch
      %171 = sbr.rel (%p168) target = $region32
    $region31: #{csp_res_stage_forward.3} parent=5 // pred_region
      %s172 = ssub.s32 %s9, 1
      %s173 = smul.u32 2, %s19
      %p174 = scmp.lt.s32.totalorder %s18, 1
      %s175 = scalar_select %p174, %s18, 1
      %p176 = scmp.lt.s32.totalorder %s173, 1
      %s177 = scalar_select %p176, %s173, 1
      %s178 = smul.addr %s175, 2
      %s179 = sadd.s32 %s177, %s178
      %s180 = smul.addr %s179, 8
      %s181 = scalar_lea.vmem %s0, %s180
      %p182 = pneg %p49
      %p183 = pneg %p46
      %p184 = scmp.lt.s32.totalorder %s18, 1
      %s185 = scalar_select %p184, %s18, 1
      %s186 = smul.addr %s185, 8
      %s187 = scalar_lea.vmem %s1, %s186
      %p188 = pneg %p75
      %p189 = pneg %p72
      %p190 = pneg %p96
      %p191 = pneg %p93
      %p192 = pneg %p124
      %p193 = pneg %p121
      %s194 = smul.u32 2, %s19
      %p195 = scmp.lt.s32.totalorder %s18, 1
      %s196 = scalar_select %p195, %s18, 1
      %p197 = scmp.lt.s32.totalorder %s194, 1
      %s198 = scalar_select %p197, %s194, 1
      %s199 = smul.addr %s196, 2
      %s200 = sadd.s32 %s198, %s199
      %s201 = smul.addr %s200, 8
      %s202 = scalar_lea.vmem %s3, %s201
      %s203 = smul.u32 2, %s19
      %p204 = scmp.lt.s32.totalorder %s18, 1
      %s205 = scalar_select %p204, %s18, 1
      %p206 = scmp.lt.s32.totalorder %s203, 1
      %s207 = scalar_select %p206, %s203, 1
      %s208 = smul.addr %s205, 2
      %s209 = sadd.s32 %s207, %s208
      %s210 = smul.addr %s209, 8
      %s211 = scalar_lea.vmem %s0, %s210
      %s212 = smul.u32 2, %s19
      %p213 = scmp.lt.s32.totalorder %s18, 1
      %s214 = scalar_select %p213, %s18, 1
      %s215 = smul.addr %s214, 8
      %s216 = scalar_lea.vmem %s1, %s215
      %s217 = smul.u32 2, %s19
      %p218 = scmp.lt.s32.totalorder %s18, 1
      %s219 = scalar_select %p218, %s18, 1
      %p220 = scmp.lt.s32.totalorder %s217, 1
      %s221 = scalar_select %p220, %s217, 1
      %s222 = smul.addr %s219, 2
      %s223 = sadd.s32 %s221, %s222
      %s224 = smul.addr %s223, 8
      %s225 = scalar_lea.vmem %s3, %s224
      %s226 = smul.u32 2, %s19
      %v227 = vld [vmem:[%s216] sm:$0xff]
      %v228 = vld [vmem:[%s211] sm:$0xff]
      %v229 = vld [vmem:[%s211 + $0x8] sm:$0xff]
      %v230 = vld [vmem:[%s2] sm:$0xff]
      %232 = vset.pattern.permute.xlu0 0
      %233 = vperm.xlu0 %232, %v230
      %v234 = vpop.permute.xlu0 %233
      %vm236 = vcmask 64512
      %v238 = vsel %vm236, %v227, 0
      %240 = vmatpush.msra.mxu0 0.0
      %241 = vmatpush.msra.mxu0 0.0
      %242 = vmatpush.msra.mxu0 0.0
      %243 = vmatpush.msra.mxu0 0.0
      %244 = vmatpush.msra.mxu0 0.0
      %245 = vmatpush.msra.mxu0 0.0
      %246 = vmatpush.msra.mxu0 0.0
      %247 = vmatpush.msra.mxu0 0.0
      %248 = vmatpush.msra.mxu0 0.0
      %249 = vmatpush.msra.mxu0 0.0
      %250 = vmatpush.msra.mxu0 0.0
      %251 = vmatpush.msra.mxu0 0.0
      %252 = vmatpush.msra.mxu0 0.0
      %253 = vmatpush.msra.mxu0 0.0
      %254 = vmatpush.msra.mxu0 0.0
      %255 = vmatpush.msra.mxu0 %v228
      %256 = vmatmul.f32.gmra.mxu0 %v238
      %v257 = vpop.f32.mrf.mxu0
      %v258 = vadd.f32 %v234, %v257
      %259 = vdwg.mxu0
      %260 = vmatpush.msra.mxu0 0.0
      %261 = vmatpush.msra.mxu0 0.0
      %262 = vmatpush.msra.mxu0 0.0
      %263 = vmatpush.msra.mxu0 0.0
      %264 = vmatpush.msra.mxu0 0.0
      %265 = vmatpush.msra.mxu0 0.0
      %266 = vmatpush.msra.mxu0 0.0
      %267 = vmatpush.msra.mxu0 0.0
      %268 = vmatpush.msra.mxu0 0.0
      %269 = vmatpush.msra.mxu0 0.0
      %270 = vmatpush.msra.mxu0 0.0
      %271 = vmatpush.msra.mxu0 0.0
      %272 = vmatpush.msra.mxu0 0.0
      %273 = vmatpush.msra.mxu0 0.0
      %274 = vmatpush.msra.mxu0 0.0
      %275 = vmatpush.msra.mxu0 %v229
      %276 = vmatmul.f32.gmra.mxu0 %v238
      %v277 = vpop.f32.mrf.mxu0
      %v278 = vadd.f32 %v234, %v277
      %279 = vdwg.mxu0
      %v280 = vmax.f32 %v258, 0.0
      %v281 = vmax.f32 %v278, 0.0
      %282 = vst [vmem:[%s225] sm:$0xff] %v280
      %283 = vst [vmem:[%s225 + $0x8] sm:$0xff] %v281
      %s284 = smul.u32 2, %s19
      %p285 = scmp.lt.s32.totalorder %s18, 1
      %s286 = scalar_select %p285, %s18, 1
      %p287 = scmp.lt.s32.totalorder %s284, 1
      %s288 = scalar_select %p287, %s284, 1
      %s289 = smul.addr %s286, 2
      %s290 = sadd.s32 %s288, %s289
      %s291 = smul.addr %s290, 8
      %s292 = scalar_lea.vmem %s3, %s291
      // Predicated region
      $region33: #{csp_res_stage_forward.3} parent=31 // pred_check
        %p293 = pneg %p121
      $region34: #{csp_res_stage_forward.3} parent=31 // pred_check_branch
        %295 = sbr.rel (%p293) target = $region36
      $region35: #{csp_res_stage_forward.3} parent=31 // pred_region
        %s296 = smul.u32 2, %s19
      $region36: #{csp_res_stage_forward.3} parent=31 // pred_fallthru
        _
    $region32: #{csp_res_stage_forward.3} parent=5 // pred_fallthru
      _
    %p297 = scmp.le.s32.totalorder 2, %s9
    // Predicated region
    $region37: #{csp_res_stage_forward.3} parent=5 // pred_check
      %p298 = pneg %p297
    $region38: #{csp_res_stage_forward.3} parent=5 // pred_check_branch
      %300 = sbr.rel (%p298) target = $region40
    $region39: #{csp_res_stage_forward.3} parent=5 // pred_region
      %s301 = ssub.s32 %s9, 2
      // Predicated region
      $region41: #{csp_res_stage_forward.3} parent=39 // pred_check
        %p302 = pneg %p127
      $region42: #{csp_res_stage_forward.3} parent=39 // pred_check_branch
        %304 = sbr.rel (%p302) target = $region44
      $region43: #{csp_res_stage_forward.3} parent=39 // pred_region
        %s305 = smul.u32 2, %s21
        %p306 = scmp.lt.s32.totalorder %s20, 1
        %s307 = scalar_select %p306, %s20, 1
        %p308 = scmp.lt.s32.totalorder %s305, 1
        %s309 = scalar_select %p308, %s305, 1
        %s310 = smul.addr %s307, 2
        %s311 = sadd.s32 %s309, %s310
        %s312 = smul.addr %s311, 8
        %s313 = scalar_lea.vmem %s3, %s312
      $region44: #{csp_res_stage_forward.3} parent=39 // pred_fallthru
        _
    $region40: #{csp_res_stage_forward.3} parent=5 // pred_fallthru
      _
  $region6: #{csp_res_stage_forward.3} parent=0 // loop_footer
    %s13 = sadd.s32 1, %s9
  $region7: #{csp_res_stage_forward.3} parent=0 // loop_footer_branch
    %8 = sbr.rel target = $region3
  $region8: #{csp_res_stage_forward.3} parent=0 // loop_exit
    _

</llo_original>
